<compile_context>
chip_gen: v7x
topology: tpu7x:2x2x1
jax: 0.10.0
libtpu: 0.0.40
codegen_flags: <defaults>
</compile_context>

<pallas_src>
import functools
import math

import numpy as np
import jax
import jax.numpy as jnp
from jax.experimental import pallas as pl
from jax.experimental.pallas import tpu as pltpu


# ----------------------------- parameter setup ------------------------------

def _mask_radial(rows, cols, r):
    # Identical to LowPass.mask_radial / distance: uses `rows` as imageSize
    # for both axes (PyTorch module quirk), strict `< r` comparison.
    ii = np.arange(rows)[:, None].astype(np.float64)
    jj = np.arange(cols)[None, :].astype(np.float64)
    dis = np.sqrt((ii - rows / 2.0) ** 2 + (jj - rows / 2.0) ** 2)
    return (dis < r).astype(np.float32)


def _dft_mat(n):
    # Forward DFT matrix (real, imag).  The inverse is conj(.)/n; the 1/n
    # factors are folded into the mask so no separate IDFT constants are needed.
    k = np.arange(n)
    w = np.exp(-2j * np.pi * np.outer(k, k) / n)
    return w.real.astype(np.float32), w.imag.astype(np.float32)


# --------------------------------- kernel -----------------------------------

def _lowpass_kernel(x_ref, m_ref, fhr_ref, fhi_ref, gwr_ref, gwi_ref, o_ref,
                    *, mxu_dtype):
    # x : (H, TB*W)  TB images stacked along lanes (lane-dense, 128-aligned)
    # m : (H, TB*W)  ifftshifted radial mask, tiled per image, scaled by 1/(H*W)
    # fh: (H, H)     row DFT matrix (re, im)
    # gw: (TBW, TBW) block-diagonal kron(I_TB, F_W) column DFT (re, im)
    x = x_ref[...]
    m = m_ref[...]
    fhr, fhi = fhr_ref[...], fhi_ref[...]
    gwr, gwi = gwr_ref[...], gwi_ref[...]

    def mm(a, b):
        return jnp.dot(a.astype(mxu_dtype), b.astype(mxu_dtype),
                       preferred_element_type=jnp.float32)

    # Stage 1: T = F_H @ X  (X real)                         -> 2 matmuls
    t_re = mm(fhr, x)
    t_im = mm(fhi, x)

    # Stage 2: A = T @ G_W  (complex*complex, Karatsuba)     -> 3 matmuls
    p1 = mm(t_re, gwr)
    p2 = mm(t_im, gwi)
    p3 = mm(t_re + t_im, gwr + gwi)
    a_re = p1 - p2
    a_im = p3 - p1 - p2

    # Low-pass mask (already ifftshifted; carries the 1/(H*W) normalisation)
    b_re = m * a_re
    b_im = m * a_im

    # Stage 3: U = conj(F_H) @ B  (Karatsuba, L_i = -fhi)    -> 3 matmuls
    q1 = mm(fhr, b_re)
    q2 = mm(fhi, b_im)
    q3 = mm(fhr - fhi, b_re + b_im)
    u_re = q1 + q2            # fhr@b_re + fhi@b_im
    u_im = q3 - q1 + q2       # fhr@b_im - fhi@b_re

    # Stage 4: Y = real(U @ conj(G_W))                        -> 2 matmuls
    o_ref[...] = mm(u_re, gwr) + mm(u_im, gwi)


# ------------------------------- JAX wrapper ---------------------------------

def low_pass_images(x, frequency_radius, *, mxu_dtype=jnp.float32):
    """x: (B, C, H, W) float32, NCHW.  Returns low-pass filtered images.

    Set mxu_dtype=jnp.bfloat16 on v6e/v7x for ~3x MXU throughput (re-validate
    accuracy for the production image size before enabling).
    """
    B, C, H, W = x.shape
    N = B * C

    # Images per grid step so the lane dimension of every block is a multiple
    # of 128 (TB*W = lcm(W, 128)).  For W already a multiple of 128, TB == 1
    # and the block-diagonal matrix degenerates to F_W (no wasted flops).
    tb = 128 // math.gcd(W, 128)
    tbw = tb * W
    n_pad = ((N + tb - 1) // tb) * tb
    grid = n_pad // tb

    # Constants (host-side, numpy).
    mask = _mask_radial(H, W, frequency_radius)
    mask_sh = np.fft.ifftshift(mask) / float(H * W)          # fold IDFT norm
    mask_t = np.tile(mask_sh, (1, tb)).astype(np.float32)    # (H, TBW)

    fhr, fhi = _dft_mat(H)
    fwr, fwi = _dft_mat(W)
    eye = np.eye(tb, dtype=np.float32)
    gwr = np.kron(eye, fwr).astype(np.float32)               # (TBW, TBW)
    gwi = np.kron(eye, fwi).astype(np.float32)

    # Lane-dense input layout: (N, H, W) -> (H, N_pad * W).
    xf = x.reshape(N, H, W).astype(jnp.float32)
    if n_pad != N:
        xf = jnp.concatenate(
            [xf, jnp.zeros((n_pad - N, H, W), jnp.float32)], axis=0)
    xs = jnp.transpose(xf, (1, 0, 2)).reshape(H, n_pad * W)

    kernel = functools.partial(_lowpass_kernel, mxu_dtype=mxu_dtype)

    def const(shape):
        return pl.BlockSpec(shape, lambda n: (0, 0))

    out = pl.pallas_call(
        kernel,
        out_shape=jax.ShapeDtypeStruct((H, n_pad * W), jnp.float32),
        grid_spec=pltpu.PrefetchScalarGridSpec(
            num_scalar_prefetch=0,
            grid=(grid,),
            in_specs=[
                pl.BlockSpec((H, tbw), lambda n: (0, n)),    # x slab
                const((H, tbw)),                             # mask (tiled)
                const((H, H)), const((H, H)),                # F_H re/im
                const((tbw, tbw)), const((tbw, tbw)),        # kron(I, F_W) re/im
            ],
            out_specs=pl.BlockSpec((H, tbw), lambda n: (0, n)),
        ),
        compiler_params=pltpu.CompilerParams(
            dimension_semantics=("parallel",)),
    )(xs, jnp.asarray(mask_t),
      jnp.asarray(fhr), jnp.asarray(fhi),
      jnp.asarray(gwr), jnp.asarray(gwi))

    out = out.reshape(H, n_pad, W).transpose(1, 0, 2)[:N]
    return out.reshape(B, C, H, W)


def lowpass_forward(x, key, frequency_radius=15, p=0.5):
    """Full forward: apply the low-pass with probability p (tensor path only)."""
    # TODO(synk): the PIL.Image / numpy branch of forward() is host-side
    # data-loading code with no Pallas equivalent; only the tensor path is
    # implemented.
    low = low_pass_images(x, frequency_radius)
    gate = jax.random.uniform(key, ()) < p     # mirrors `torch.rand(1) < self.p`
    return jnp.where(gate, low, x)


# ------------------------------ reference check ------------------------------

def _ref_lowpass(x, r):
    mask = jnp.asarray(_mask_radial(x.shape[-2], x.shape[-1], r))
    fc = jnp.fft.fftshift(jnp.fft.fft2(x), axes=(-2, -1))
    fc = fc * mask
    rec = jnp.fft.ifft2(jnp.fft.ifftshift(fc, axes=(-2, -1)))
    return jnp.real(rec).astype(jnp.float32)


if __name__ == "__main__":
    B, C, H, W = 2, 4, 16, 16
    frequency_radius = 5   # module default is 15, but 15 > max distance for 16x16
    p = 0.5

    key = jax.random.PRNGKey(0)
    kx, kgate = jax.random.split(key)
    x = jax.random.normal(kx, (B, C, H, W), dtype=jnp.float32)

    # Pure low-pass path (the hot path implemented in the Pallas kernel).
    low = low_pass_images(x, frequency_radius)
    low = jax.block_until_ready(low)

    # Correctness check against the jnp.fft reference.
    ref = _ref_lowpass(x, frequency_radius)
    np.testing.assert_allclose(np.asarray(low), np.asarray(ref),
                               rtol=1e-3, atol=1e-3)

    # Full forward with the stochastic gate (matches `torch.rand(1) < p`).
    out = lowpass_forward(x, kgate, frequency_radius=frequency_radius, p=p)
    out = jax.block_until_ready(out)
    assert out.shape == x.shape and out.dtype == jnp.float32

    print("KERNEL_OK")
</pallas_src>

<mosaic_0001>
module attributes {stable_mosaic.version = 11 : i64} {
  func.func @_lowpass_kernel(%arg0: i32, %arg1: memref<16x128xf32, #tpu.memory_space<vmem>>, %arg2: memref<16x128xf32, #tpu.memory_space<vmem>>, %arg3: memref<16x16xf32, #tpu.memory_space<vmem>>, %arg4: memref<16x16xf32, #tpu.memory_space<vmem>>, %arg5: memref<128x128xf32, #tpu.memory_space<vmem>>, %arg6: memref<128x128xf32, #tpu.memory_space<vmem>>, %arg7: memref<16x128xf32, #tpu.memory_space<vmem>>) attributes {dimension_semantics = [#tpu.dimension_semantics<parallel>], iteration_bounds = array<i64: 1>, scalar_prefetch = 0 : i64, scratch_operands = 0 : i64, tpu.core_type = #tpu.core_type<tc>, window_params = [{transform_indices = @transform_0, window_bounds = array<i64: 16, 128>}, {pipeline_mode = #tpu.pipeline_mode<synchronous>, transform_indices = @transform_1, window_bounds = array<i64: 16, 128>}, {pipeline_mode = #tpu.pipeline_mode<synchronous>, transform_indices = @transform_2, window_bounds = array<i64: 16, 16>}, {pipeline_mode = #tpu.pipeline_mode<synchronous>, transform_indices = @transform_3, window_bounds = array<i64: 16, 16>}, {pipeline_mode = #tpu.pipeline_mode<synchronous>, transform_indices = @transform_4, window_bounds = array<i64: 128, 128>}, {pipeline_mode = #tpu.pipeline_mode<synchronous>, transform_indices = @transform_5, window_bounds = array<i64: 128, 128>}, {transform_indices = @transform_6, window_bounds = array<i64: 16, 128>}]} {
    %c0 = arith.constant 0 : index
    %c0_0 = arith.constant 0 : index
    %0 = vector.load %arg1[%c0, %c0_0] : memref<16x128xf32, #tpu.memory_space<vmem>>, vector<16x128xf32>
    %c0_1 = arith.constant 0 : index
    %c0_2 = arith.constant 0 : index
    %1 = vector.load %arg2[%c0_1, %c0_2] : memref<16x128xf32, #tpu.memory_space<vmem>>, vector<16x128xf32>
    %c0_3 = arith.constant 0 : index
    %c0_4 = arith.constant 0 : index
    %2 = vector.load %arg3[%c0_3, %c0_4] : memref<16x16xf32, #tpu.memory_space<vmem>>, vector<16x16xf32>
    %c0_5 = arith.constant 0 : index
    %c0_6 = arith.constant 0 : index
    %3 = vector.load %arg4[%c0_5, %c0_6] : memref<16x16xf32, #tpu.memory_space<vmem>>, vector<16x16xf32>
    %c0_7 = arith.constant 0 : index
    %c0_8 = arith.constant 0 : index
    %4 = vector.load %arg5[%c0_7, %c0_8] : memref<128x128xf32, #tpu.memory_space<vmem>>, vector<128x128xf32>
    %c0_9 = arith.constant 0 : index
    %c0_10 = arith.constant 0 : index
    %5 = vector.load %arg6[%c0_9, %c0_10] : memref<128x128xf32, #tpu.memory_space<vmem>>, vector<128x128xf32>
    %cst = arith.constant dense<0.000000e+00> : vector<16x128xf32>
    %6 = tpu.matmul %2, %0, %cst {dimension_numbers = #tpu.dot_dimension_numbers<[1], [0], [0], [1], [0, 0, 1, 1], [], []>} : vector<16x16xf32>, vector<16x128xf32>, vector<16x128xf32> -> vector<16x128xf32>
    %cst_11 = arith.constant dense<0.000000e+00> : vector<16x128xf32>
    %7 = tpu.matmul %3, %0, %cst_11 {dimension_numbers = #tpu.dot_dimension_numbers<[1], [0], [0], [1], [0, 0, 1, 1], [], []>} : vector<16x16xf32>, vector<16x128xf32>, vector<16x128xf32> -> vector<16x128xf32>
    %cst_12 = arith.constant dense<0.000000e+00> : vector<16x128xf32>
    %8 = tpu.matmul %6, %4, %cst_12 {dimension_numbers = #tpu.dot_dimension_numbers<[1], [0], [0], [1], [0, 0, 1, 1], [], []>} : vector<16x128xf32>, vector<128x128xf32>, vector<16x128xf32> -> vector<16x128xf32>
    %cst_13 = arith.constant dense<0.000000e+00> : vector<16x128xf32>
    %9 = tpu.matmul %7, %5, %cst_13 {dimension_numbers = #tpu.dot_dimension_numbers<[1], [0], [0], [1], [0, 0, 1, 1], [], []>} : vector<16x128xf32>, vector<128x128xf32>, vector<16x128xf32> -> vector<16x128xf32>
    %10 = arith.addf %6, %7 : vector<16x128xf32>
    %11 = arith.addf %4, %5 : vector<128x128xf32>
    %cst_14 = arith.constant dense<0.000000e+00> : vector<16x128xf32>
    %12 = tpu.matmul %10, %11, %cst_14 {dimension_numbers = #tpu.dot_dimension_numbers<[1], [0], [0], [1], [0, 0, 1, 1], [], []>} : vector<16x128xf32>, vector<128x128xf32>, vector<16x128xf32> -> vector<16x128xf32>
    %13 = arith.subf %8, %9 : vector<16x128xf32>
    %14 = arith.subf %12, %8 : vector<16x128xf32>
    %15 = arith.subf %14, %9 : vector<16x128xf32>
    %16 = arith.mulf %1, %13 : vector<16x128xf32>
    %17 = arith.mulf %1, %15 : vector<16x128xf32>
    %cst_15 = arith.constant dense<0.000000e+00> : vector<16x128xf32>
    %18 = tpu.matmul %2, %16, %cst_15 {dimension_numbers = #tpu.dot_dimension_numbers<[1], [0], [0], [1], [0, 0, 1, 1], [], []>} : vector<16x16xf32>, vector<16x128xf32>, vector<16x128xf32> -> vector<16x128xf32>
    %cst_16 = arith.constant dense<0.000000e+00> : vector<16x128xf32>
    %19 = tpu.matmul %3, %17, %cst_16 {dimension_numbers = #tpu.dot_dimension_numbers<[1], [0], [0], [1], [0, 0, 1, 1], [], []>} : vector<16x16xf32>, vector<16x128xf32>, vector<16x128xf32> -> vector<16x128xf32>
    %20 = arith.subf %2, %3 : vector<16x16xf32>
    %21 = arith.addf %16, %17 : vector<16x128xf32>
    %cst_17 = arith.constant dense<0.000000e+00> : vector<16x128xf32>
    %22 = tpu.matmul %20, %21, %cst_17 {dimension_numbers = #tpu.dot_dimension_numbers<[1], [0], [0], [1], [0, 0, 1, 1], [], []>} : vector<16x16xf32>, vector<16x128xf32>, vector<16x128xf32> -> vector<16x128xf32>
    %23 = arith.addf %18, %19 : vector<16x128xf32>
    %24 = arith.subf %22, %18 : vector<16x128xf32>
    %25 = arith.addf %24, %19 : vector<16x128xf32>
    %cst_18 = arith.constant dense<0.000000e+00> : vector<16x128xf32>
    %26 = tpu.matmul %23, %4, %cst_18 {dimension_numbers = #tpu.dot_dimension_numbers<[1], [0], [0], [1], [0, 0, 1, 1], [], []>} : vector<16x128xf32>, vector<128x128xf32>, vector<16x128xf32> -> vector<16x128xf32>
    %cst_19 = arith.constant dense<0.000000e+00> : vector<16x128xf32>
    %27 = tpu.matmul %25, %5, %cst_19 {dimension_numbers = #tpu.dot_dimension_numbers<[1], [0], [0], [1], [0, 0, 1, 1], [], []>} : vector<16x128xf32>, vector<128x128xf32>, vector<16x128xf32> -> vector<16x128xf32>
    %28 = arith.addf %26, %27 : vector<16x128xf32>
    %c0_20 = arith.constant 0 : index
    %c0_21 = arith.constant 0 : index
    %29 = vector.load %arg7[%c0_20, %c0_21] : memref<16x128xf32, #tpu.memory_space<vmem>>, vector<16x128xf32>
    tpu.vector_store %arg7[%c0_20, %c0_21], %28 {strides = array<i32>} : memref<16x128xf32, #tpu.memory_space<vmem>>, vector<16x128xf32>,
    return
  }
  func.func @transform_0(%arg0: i32) -> (i32, i32) {
    %c0_i32 = arith.constant 0 : i32
    %c0_i32_0 = arith.constant 0 : i32
    return %c0_i32, %arg0 : i32, i32
  }
  func.func @transform_1(%arg0: i32) -> (i32, i32) {
    %c0_i32 = arith.constant 0 : i32
    %c0_i32_0 = arith.constant 0 : i32
    %c0_i32_1 = arith.constant 0 : i32
    return %c0_i32, %c0_i32_0 : i32, i32
  }
  func.func @transform_2(%arg0: i32) -> (i32, i32) {
    %c0_i32 = arith.constant 0 : i32
    %c0_i32_0 = arith.constant 0 : i32
    %c0_i32_1 = arith.constant 0 : i32
    return %c0_i32, %c0_i32_0 : i32, i32
  }
  func.func @transform_3(%arg0: i32) -> (i32, i32) {
    %c0_i32 = arith.constant 0 : i32
    %c0_i32_0 = arith.constant 0 : i32
    %c0_i32_1 = arith.constant 0 : i32
    return %c0_i32, %c0_i32_0 : i32, i32
  }
  func.func @transform_4(%arg0: i32) -> (i32, i32) {
    %c0_i32 = arith.constant 0 : i32
    %c0_i32_0 = arith.constant 0 : i32
    %c0_i32_1 = arith.constant 0 : i32
    return %c0_i32, %c0_i32_0 : i32, i32
  }
  func.func @transform_5(%arg0: i32) -> (i32, i32) {
    %c0_i32 = arith.constant 0 : i32
    %c0_i32_0 = arith.constant 0 : i32
    %c0_i32_1 = arith.constant 0 : i32
    return %c0_i32, %c0_i32_0 : i32, i32
  }
  func.func @transform_6(%arg0: i32) -> (i32, i32) {
    %c0_i32 = arith.constant 0 : i32
    %c0_i32_0 = arith.constant 0 : i32
    return %c0_i32, %arg0 : i32, i32
  }
}

</mosaic_0001>

<llo_original>
// kernel: tpu_custom_call.1
$region0: #{tpu_custom_call.1}
  #allocation0 [shape = 'u32[]', space=smem, size = 0x4, offset = 0x4, fixed_abs, tag = 'smem constant byte address 0x4 - core index']
  #allocation1 [shape = 'u32[144,128]{1,0:T(1,128)}', space=vmem, size = 0x12000, scoped, tag = 'internal scratch']
  %s0 = inlined_call_operand.hbm [shape: f32[16,128], index: 0, kind: input, shape index: {}]
  %s1 = inlined_call_operand.hbm [shape: f32[16,128], index: 1, kind: input, shape index: {}]
  %s2 = inlined_call_operand.hbm [shape: f32[16,16], index: 2, kind: input, shape index: {}]
  %s3 = inlined_call_operand.hbm [shape: f32[16,16], index: 3, kind: input, shape index: {}]
  %s4 = inlined_call_operand.hbm [shape: f32[128,128], index: 4, kind: input, shape index: {}]
  %s5 = inlined_call_operand.hbm [shape: f32[128,128], index: 5, kind: input, shape index: {}]
  %s6 = inlined_call_operand.hbm [shape: f32[16,128], index: 6, kind: output, shape index: {}]
  %s7 = sld [smem:[#allocation0]]
  $region58: #{tpu_custom_call.1} parent=0
    _
  %s9 = ssub.s32 1, %s7
  %s10 = scalar_select 0, %s9, %s7
  $region1: #{tpu_custom_call.1} parent=0
    #allocation2 [shape = 'u8[8192]{0}', space=vmem, size = 0x2000, scoped, tag = 'input window, operand 0, single buffered']
    #allocation3 [shape = 's32[1]{0}', space=sflag, size = 0x4, scoped, tag = 'scoped memory for tpu_custom_call.1']
    #allocation4 [shape = 's32[1]{0}', space=sflag, size = 0x4, scoped, tag = 'scoped memory for tpu_custom_call.1']
    #allocation5 [shape = 'u8[8192]{0}', space=vmem, size = 0x2000, scoped, tag = 'input window, operand 1, single buffered']
    #allocation6 [shape = 's32[1]{0}', space=sflag, size = 0x4, scoped, tag = 'scoped memory for tpu_custom_call.1']
    #allocation7 [shape = 'u8[8192]{0}', space=vmem, size = 0x2000, scoped, tag = 'input window, operand 2, single buffered']
    #allocation8 [shape = 'u8[8192]{0}', space=vmem, size = 0x2000, scoped, tag = 'input window, operand 3, single buffered']
    #allocation9 [shape = 's32[1]{0}', space=sflag, size = 0x4, scoped, tag = 'scoped memory for tpu_custom_call.1']
    #allocation10 [shape = 'u8[65536]{0}', space=vmem, size = 0x10000, scoped, tag = 'input window, operand 4, single buffered']
    #allocation11 [shape = 'u8[65536]{0}', space=vmem, size = 0x10000, scoped, tag = 'input window, operand 5, single buffered']
    #allocation12 [shape = 's32[1]{0}', space=sflag, size = 0x4, scoped, tag = 'scoped memory for tpu_custom_call.1']
    #allocation13 [shape = 'u8[8192]{0}', space=vmem, size = 0x2000, scoped, tag = 'output window, operand 0, single buffered']
    %11 = vsyncpa [#allocation3], 0
    %12 = vsyncpa [#allocation6], 0
    %13 = vsyncpa [#allocation9], 0
    %14 = vsyncpa [#allocation12], 0
    %15 = vsyncpa [#allocation4], 0
    // Predicated region
    $region2: #{tpu_custom_call.1} parent=1 // pred_check
      _
    $region3: #{tpu_custom_call.1} parent=1 // pred_check_branch
      %17 = sbr.rel (0) target = $region5
    $region4: #{tpu_custom_call.1} parent=1 // pred_region
      %s19 = ssub.s32 256, 256
      %20 = vsyncadd [#allocation3], %s19
      %s21 = sshll.u32 [#allocation2], 4
      %s22 = int_to_ptr.vmem [resolvable:$true] %s21
      %27 = dma.hbm_to_vmem [thread:$0]  %s0, 256, %s22, [#allocation3], 128, 128, 8
    $region5: #{tpu_custom_call.1} parent=1 // pred_fallthru
      _
    // Predicated region
    $region6: #{tpu_custom_call.1} parent=1 // pred_check
      _
    $region7: #{tpu_custom_call.1} parent=1 // pred_check_branch
      %29 = sbr.rel (0) target = $region9
    $region8: #{tpu_custom_call.1} parent=1 // pred_region
      %s31 = ssub.s32 256, 256
      %32 = vsyncadd [#allocation6], %s31
      %s33 = sshll.u32 [#allocation5], 4
      %s34 = int_to_ptr.vmem [resolvable:$true] %s33
      %39 = dma.hbm_to_vmem [thread:$0]  %s1, 256, %s34, [#allocation6], 128, 128, 8
    $region9: #{tpu_custom_call.1} parent=1 // pred_fallthru
      _
    // Predicated region
    $region10: #{tpu_custom_call.1} parent=1 // pred_check
      _
    $region11: #{tpu_custom_call.1} parent=1 // pred_check_branch
      %41 = sbr.rel (0) target = $region13
    $region12: #{tpu_custom_call.1} parent=1 // pred_region
      %s43 = ssub.s32 256, 256
      %44 = vsyncadd [#allocation6], %s43
      %s45 = sshll.u32 [#allocation7], 4
      %s46 = int_to_ptr.vmem [resolvable:$true] %s45
      %51 = dma.hbm_to_vmem [thread:$0]  %s2, 256, %s46, [#allocation6], 128, 128, 8
    $region13: #{tpu_custom_call.1} parent=1 // pred_fallthru
      _
    // Predicated region
    $region14: #{tpu_custom_call.1} parent=1 // pred_check
      _
    $region15: #{tpu_custom_call.1} parent=1 // pred_check_branch
      %53 = sbr.rel (0) target = $region17
    $region16: #{tpu_custom_call.1} parent=1 // pred_region
      %s55 = ssub.s32 256, 256
      %56 = vsyncadd [#allocation9], %s55
      %s57 = sshll.u32 [#allocation8], 4
      %s58 = int_to_ptr.vmem [resolvable:$true] %s57
      %63 = dma.hbm_to_vmem [thread:$0]  %s3, 256, %s58, [#allocation9], 128, 128, 8
    $region17: #{tpu_custom_call.1} parent=1 // pred_fallthru
      _
    // Predicated region
    $region18: #{tpu_custom_call.1} parent=1 // pred_check
      _
    $region19: #{tpu_custom_call.1} parent=1 // pred_check_branch
      %65 = sbr.rel (0) target = $region21
    $region20: #{tpu_custom_call.1} parent=1 // pred_region
      %s67 = ssub.s32 2048, 2048
      %68 = vsyncadd [#allocation9], %s67
      %s69 = sshll.u32 [#allocation10], 4
      %s70 = int_to_ptr.vmem [resolvable:$true] %s69
      %75 = dma.hbm_to_vmem [thread:$0]  %s4, 2048, %s70, [#allocation9], 128, 128, 8
    $region21: #{tpu_custom_call.1} parent=1 // pred_fallthru
      _
    // Predicated region
    $region22: #{tpu_custom_call.1} parent=1 // pred_check
      _
    $region23: #{tpu_custom_call.1} parent=1 // pred_check_branch
      %77 = sbr.rel (0) target = $region25
    $region24: #{tpu_custom_call.1} parent=1 // pred_region
      %s79 = ssub.s32 2048, 2048
      %80 = vsyncadd [#allocation12], %s79
      %s81 = sshll.u32 [#allocation11], 4
      %s82 = int_to_ptr.vmem [resolvable:$true] %s81
      %87 = dma.hbm_to_vmem [thread:$0]  %s5, 2048, %s82, [#allocation12], 128, 128, 8
    $region25: #{tpu_custom_call.1} parent=1 // pred_fallthru
      _
    // Predicated region
    $region26: #{tpu_custom_call.1} parent=1 // pred_check
      _
    $region27: #{tpu_custom_call.1} parent=1 // pred_check_branch
      %89 = sbr.rel (0) target = $region29
    $region28: #{tpu_custom_call.1} parent=1 // pred_region
      %90 = dma.done [#allocation3], 256
    $region29: #{tpu_custom_call.1} parent=1 // pred_fallthru
      _
    // Predicated region
    $region30: #{tpu_custom_call.1} parent=1 // pred_check
      _
    $region31: #{tpu_custom_call.1} parent=1 // pred_check_branch
      %92 = sbr.rel (0) target = $region33
    $region32: #{tpu_custom_call.1} parent=1 // pred_region
      %93 = dma.done [#allocation6], 256
    $region33: #{tpu_custom_call.1} parent=1 // pred_fallthru
      _
    // Predicated region
    $region34: #{tpu_custom_call.1} parent=1 // pred_check
      _
    $region35: #{tpu_custom_call.1} parent=1 // pred_check_branch
      %95 = sbr.rel (0) target = $region37
    $region36: #{tpu_custom_call.1} parent=1 // pred_region
      %96 = dma.done [#allocation6], 256
    $region37: #{tpu_custom_call.1} parent=1 // pred_fallthru
      _
    // Predicated region
    $region38: #{tpu_custom_call.1} parent=1 // pred_check
      _
    $region39: #{tpu_custom_call.1} parent=1 // pred_check_branch
      %98 = sbr.rel (0) target = $region41
    $region40: #{tpu_custom_call.1} parent=1 // pred_region
      %99 = dma.done [#allocation9], 256
    $region41: #{tpu_custom_call.1} parent=1 // pred_fallthru
      _
    // Predicated region
    $region42: #{tpu_custom_call.1} parent=1 // pred_check
      _
    $region43: #{tpu_custom_call.1} parent=1 // pred_check_branch
      %101 = sbr.rel (0) target = $region45
    $region44: #{tpu_custom_call.1} parent=1 // pred_region
      %102 = dma.done [#allocation9], 2048
    $region45: #{tpu_custom_call.1} parent=1 // pred_fallthru
      _
    // Predicated region
    $region46: #{tpu_custom_call.1} parent=1 // pred_check
      _
    $region47: #{tpu_custom_call.1} parent=1 // pred_check_branch
      %104 = sbr.rel (0) target = $region49
    $region48: #{tpu_custom_call.1} parent=1 // pred_region
      %105 = dma.done [#allocation12], 2048
    $region49: #{tpu_custom_call.1} parent=1 // pred_fallthru
      _
    %v106 = vld [vmem:[#allocation2] sm:$0xff]
    %v107 = vld [vmem:[#allocation2 + $0x8] sm:$0xff]
    %v108 = vld [vmem:[#allocation5] sm:$0xff]
    %v109 = vld [vmem:[#allocation5 + $0x8] sm:$0xff]
    %v110 = vld [vmem:[#allocation7] sm:$0xff]
    %v111 = vld [vmem:[#allocation7 + $0x8] sm:$0xff]
    %v112 = vld [vmem:[#allocation8] sm:$0xff]
    %v113 = vld [vmem:[#allocation8 + $0x8] sm:$0xff]
    %v114 = vld [vmem:[#allocation10] sm:$0xff]
    %v115 = vld [vmem:[#allocation10 + $0x8] sm:$0xff]
    %v116 = vld [vmem:[#allocation10 + $0x10] sm:$0xff]
    %v117 = vld [vmem:[#allocation10 + $0x18] sm:$0xff]
    %v118 = vld [vmem:[#allocation10 + $0x20] sm:$0xff]
    %v119 = vld [vmem:[#allocation10 + $0x28] sm:$0xff]
    %v120 = vld [vmem:[#allocation10 + $0x30] sm:$0xff]
    %v121 = vld [vmem:[#allocation10 + $0x38] sm:$0xff]
    %v122 = vld [vmem:[#allocation10 + $0x40] sm:$0xff]
    %v123 = vld [vmem:[#allocation10 + $0x48] sm:$0xff]
    %v124 = vld [vmem:[#allocation10 + $0x50] sm:$0xff]
    %v125 = vld [vmem:[#allocation10 + $0x58] sm:$0xff]
    %v126 = vld [vmem:[#allocation10 + $0x60] sm:$0xff]
    %v127 = vld [vmem:[#allocation10 + $0x68] sm:$0xff]
    %v128 = vld [vmem:[#allocation10 + $0x70] sm:$0xff]
    %v129 = vld [vmem:[#allocation10 + $0x78] sm:$0xff]
    %v130 = vld [vmem:[#allocation11] sm:$0xff]
    %v131 = vld [vmem:[#allocation11 + $0x8] sm:$0xff]
    %v132 = vld [vmem:[#allocation11 + $0x10] sm:$0xff]
    %v133 = vld [vmem:[#allocation11 + $0x18] sm:$0xff]
    %v134 = vld [vmem:[#allocation11 + $0x20] sm:$0xff]
    %v135 = vld [vmem:[#allocation11 + $0x28] sm:$0xff]
    %v136 = vld [vmem:[#allocation11 + $0x30] sm:$0xff]
    %v137 = vld [vmem:[#allocation11 + $0x38] sm:$0xff]
    %v138 = vld [vmem:[#allocation11 + $0x40] sm:$0xff]
    %v139 = vld [vmem:[#allocation11 + $0x48] sm:$0xff]
    %v140 = vld [vmem:[#allocation11 + $0x50] sm:$0xff]
    %v141 = vld [vmem:[#allocation11 + $0x58] sm:$0xff]
    %v142 = vld [vmem:[#allocation11 + $0x60] sm:$0xff]
    %v143 = vld [vmem:[#allocation11 + $0x68] sm:$0xff]
    %v144 = vld [vmem:[#allocation11 + $0x70] sm:$0xff]
    %v145 = vld [vmem:[#allocation11 + $0x78] sm:$0xff]
    %vm146 = vcmask 130048
    %v148 = vsel %vm146, %v110, 0
    %v151 = vsel %vm146, %v111, 0
    %153 = vmatprep.subr.mxu0 0.0
    %154 = vmatpush1.msra.mxu0 %v106
    %155 = vmatprep.subr.mxu0 0.0
    %156 = vmatpush1.msra.mxu0 %v107
    %157 = vmatprep.subr.mxu0 0.0
    %158 = vmatpush1.msra.mxu0 0.0
    %159 = vmatprep.subr.mxu0 0.0
    %160 = vmatpush1.msra.mxu0 0.0
    %161 = vmatprep.subr.mxu0 0.0
    %162 = vmatpush1.msra.mxu0 0.0
    %163 = vmatprep.subr.mxu0 0.0
    %164 = vmatpush1.msra.mxu0 0.0
    %165 = vmatprep.subr.mxu0 0.0
    %166 = vmatpush1.msra.mxu0 0.0
    %167 = vmatprep.subr.mxu0 0.0
    %168 = vmatpush1.msra.mxu0 0.0
    %169 = vmatprep.subr.mxu0 0.0
    %170 = vmatpush1.msra.mxu0 0.0
    %171 = vmatprep.subr.mxu0 0.0
    %172 = vmatpush1.msra.mxu0 0.0
    %173 = vmatprep.subr.mxu0 0.0
    %174 = vmatpush1.msra.mxu0 0.0
    %175 = vmatprep.subr.mxu0 0.0
    %176 = vmatpush1.msra.mxu0 0.0
    %177 = vmatprep.subr.mxu0 0.0
    %178 = vmatpush1.msra.mxu0 0.0
    %179 = vmatprep.subr.mxu0 0.0
    %180 = vmatpush1.msra.mxu0 0.0
    %181 = vmatprep.subr.mxu0 0.0
    %182 = vmatpush1.msra.mxu0 0.0
    %183 = vmatprep.subr.mxu0 0.0
    %184 = vmatpush1.msra.mxu0 0.0
    %185 = vmatprep.subr.mxu0 0.0
    %186 = vmatpush1.msra.mxu0 0.0
    %187 = vmatprep.subr.mxu0 0.0
    %188 = vmatpush1.msra.mxu0 0.0
    %189 = vmatprep.subr.mxu0 0.0
    %190 = vmatpush1.msra.mxu0 0.0
    %191 = vmatprep.subr.mxu0 0.0
    %192 = vmatpush1.msra.mxu0 0.0
    %193 = vmatprep.subr.mxu0 0.0
    %194 = vmatpush1.msra.mxu0 0.0
    %195 = vmatprep.subr.mxu0 0.0
    %196 = vmatpush1.msra.mxu0 0.0
    %197 = vmatprep.subr.mxu0 0.0
    %198 = vmatpush1.msra.mxu0 0.0
    %199 = vmatprep.subr.mxu0 0.0
    %200 = vmatpush1.msra.mxu0 0.0
    %201 = vmatprep.subr.mxu0 0.0
    %202 = vmatpush1.msra.mxu0 0.0
    %203 = vmatprep.subr.mxu0 0.0
    %204 = vmatpush1.msra.mxu0 0.0
    %205 = vmatprep.subr.mxu0 0.0
    %206 = vmatpush1.msra.mxu0 0.0
    %207 = vmatprep.subr.mxu0 0.0
    %208 = vmatpush1.msra.mxu0 0.0
    %209 = vmatprep.subr.mxu0 0.0
    %210 = vmatpush1.msra.mxu0 0.0
    %211 = vmatprep.subr.mxu0 0.0
    %212 = vmatpush1.msra.mxu0 0.0
    %213 = vmatprep.subr.mxu0 0.0
    %214 = vmatpush1.msra.mxu0 0.0
    %215 = vmatprep.subr.mxu0 0.0
    %216 = vmatpush1.msra.mxu0 0.0
    %217 = vmatprep.mubr.f32.mxu0 0.0
    %218 = vmatmul.mubr.f32.gmra.mrb[0].mxu0 %v148
    %v219 = vpop.f32.mrb[0].mxu0
    %v220 = vadd.f32 0.0, %v219
    %v221 = vpop.f32.mrb[0].mxu0
    %222 = vmatprep.mubr.f32.mxu0 0.0
    %223 = vmatmul.mubr.f32.gmra.mrb[0].mxu0 %v151
    %v224 = vpop.f32.mrb[0].mxu0
    %v225 = vadd.f32 0.0, %v224
    %v226 = vpop.f32.mrb[0].mxu0
    %227 = vdwg.mxu0
    %v229 = vsel %vm146, %v112, 0
    %v232 = vsel %vm146, %v113, 0
    %234 = vmatprep.subr.mxu0 0.0
    %235 = vmatpush1.msra.mxu0 %v106
    %236 = vmatprep.subr.mxu0 0.0
    %237 = vmatpush1.msra.mxu0 %v107
    %238 = vmatprep.subr.mxu0 0.0
    %239 = vmatpush1.msra.mxu0 0.0
    %240 = vmatprep.subr.mxu0 0.0
    %241 = vmatpush1.msra.mxu0 0.0
    %242 = vmatprep.subr.mxu0 0.0
    %243 = vmatpush1.msra.mxu0 0.0
    %244 = vmatprep.subr.mxu0 0.0
    %245 = vmatpush1.msra.mxu0 0.0
    %246 = vmatprep.subr.mxu0 0.0
    %247 = vmatpush1.msra.mxu0 0.0
    %248 = vmatprep.subr.mxu0 0.0
    %249 = vmatpush1.msra.mxu0 0.0
    %250 = vmatprep.subr.mxu0 0.0
    %251 = vmatpush1.msra.mxu0 0.0
    %252 = vmatprep.subr.mxu0 0.0
    %253 = vmatpush1.msra.mxu0 0.0
    %254 = vmatprep.subr.mxu0 0.0
    %255 = vmatpush1.msra.mxu0 0.0
    %256 = vmatprep.subr.mxu0 0.0
    %257 = vmatpush1.msra.mxu0 0.0
    %258 = vmatprep.subr.mxu0 0.0
    %259 = vmatpush1.msra.mxu0 0.0
    %260 = vmatprep.subr.mxu0 0.0
    %261 = vmatpush1.msra.mxu0 0.0
    %262 = vmatprep.subr.mxu0 0.0
    %263 = vmatpush1.msra.mxu0 0.0
    %264 = vmatprep.subr.mxu0 0.0
    %265 = vmatpush1.msra.mxu0 0.0
    %266 = vmatprep.subr.mxu0 0.0
    %267 = vmatpush1.msra.mxu0 0.0
    %268 = vmatprep.subr.mxu0 0.0
    %269 = vmatpush1.msra.mxu0 0.0
    %270 = vmatprep.subr.mxu0 0.0
    %271 = vmatpush1.msra.mxu0 0.0
    %272 = vmatprep.subr.mxu0 0.0
    %273 = vmatpush1.msra.mxu0 0.0
    %274 = vmatprep.subr.mxu0 0.0
    %275 = vmatpush1.msra.mxu0 0.0
    %276 = vmatprep.subr.mxu0 0.0
    %277 = vmatpush1.msra.mxu0 0.0
    %278 = vmatprep.subr.mxu0 0.0
    %279 = vmatpush1.msra.mxu0 0.0
    %280 = vmatprep.subr.mxu0 0.0
    %281 = vmatpush1.msra.mxu0 0.0
    %282 = vmatprep.subr.mxu0 0.0
    %283 = vmatpush1.msra.mxu0 0.0
    %284 = vmatprep.subr.mxu0 0.0
    %285 = vmatpush1.msra.mxu0 0.0
    %286 = vmatprep.subr.mxu0 0.0
    %287 = vmatpush1.msra.mxu0 0.0
    %288 = vmatprep.subr.mxu0 0.0
    %289 = vmatpush1.msra.mxu0 0.0
    %290 = vmatprep.subr.mxu0 0.0
    %291 = vmatpush1.msra.mxu0 0.0
    %292 = vmatprep.subr.mxu0 0.0
    %293 = vmatpush1.msra.mxu0 0.0
    %294 = vmatprep.subr.mxu0 0.0
    %295 = vmatpush1.msra.mxu0 0.0
    %296 = vmatprep.subr.mxu0 0.0
    %297 = vmatpush1.msra.mxu0 0.0
    %298 = vmatprep.mubr.f32.mxu0 0.0
    %299 = vmatmul.mubr.f32.gmra.mrb[0].mxu0 %v229
    %v300 = vpop.f32.mrb[0].mxu0
    %v301 = vadd.f32 0.0, %v300
    %v302 = vpop.f32.mrb[0].mxu0
    %303 = vmatprep.mubr.f32.mxu0 0.0
    %304 = vmatmul.mubr.f32.gmra.mrb[0].mxu0 %v232
    %v305 = vpop.f32.mrb[0].mxu0
    %v306 = vadd.f32 0.0, %v305
    %v307 = vpop.f32.mrb[0].mxu0
    %308 = vdwg.mxu0
    %309 = vmatprep.subr.mxu0 0.0
    %310 = vmatpush1.msra.mxu0 %v114
    %311 = vmatprep.subr.mxu0 0.0
    %312 = vmatpush1.msra.mxu0 %v115
    %313 = vmatprep.subr.mxu0 0.0
    %314 = vmatpush1.msra.mxu0 %v116
    %315 = vmatprep.subr.mxu0 0.0
    %316 = vmatpush1.msra.mxu0 %v117
    %317 = vmatprep.subr.mxu0 0.0
    %318 = vmatpush1.msra.mxu0 %v118
    %319 = vmatprep.subr.mxu0 0.0
    %320 = vmatpush1.msra.mxu0 %v119
    %321 = vmatprep.subr.mxu0 0.0
    %322 = vmatpush1.msra.mxu0 %v120
    %323 = vmatprep.subr.mxu0 0.0
    %324 = vmatpush1.msra.mxu0 %v121
    %325 = vmatprep.subr.mxu0 0.0
    %326 = vmatpush1.msra.mxu0 %v122
    %327 = vmatprep.subr.mxu0 0.0
    %328 = vmatpush1.msra.mxu0 %v123
    %329 = vmatprep.subr.mxu0 0.0
    %330 = vmatpush1.msra.mxu0 %v124
    %331 = vmatprep.subr.mxu0 0.0
    %332 = vmatpush1.msra.mxu0 %v125
    %333 = vmatprep.subr.mxu0 0.0
    %334 = vmatpush1.msra.mxu0 %v126
    %335 = vmatprep.subr.mxu0 0.0
    %336 = vmatpush1.msra.mxu0 %v127
    %337 = vmatprep.subr.mxu0 0.0
    %338 = vmatpush1.msra.mxu0 %v128
    %339 = vmatprep.subr.mxu0 0.0
    %340 = vmatpush1.msra.mxu0 %v129
    %341 = vmatprep.subr.mxu0 0.0
    %342 = vmatpush1.msra.mxu0 0.0
    %343 = vmatprep.subr.mxu0 0.0
    %344 = vmatpush1.msra.mxu0 0.0
    %345 = vmatprep.subr.mxu0 0.0
    %346 = vmatpush1.msra.mxu0 0.0
    %347 = vmatprep.subr.mxu0 0.0
    %348 = vmatpush1.msra.mxu0 0.0
    %349 = vmatprep.subr.mxu0 0.0
    %350 = vmatpush1.msra.mxu0 0.0
    %351 = vmatprep.subr.mxu0 0.0
    %352 = vmatpush1.msra.mxu0 0.0
    %353 = vmatprep.subr.mxu0 0.0
    %354 = vmatpush1.msra.mxu0 0.0
    %355 = vmatprep.subr.mxu0 0.0
    %356 = vmatpush1.msra.mxu0 0.0
    %357 = vmatprep.subr.mxu0 0.0
    %358 = vmatpush1.msra.mxu0 0.0
    %359 = vmatprep.subr.mxu0 0.0
    %360 = vmatpush1.msra.mxu0 0.0
    %361 = vmatprep.subr.mxu0 0.0
    %362 = vmatpush1.msra.mxu0 0.0
    %363 = vmatprep.subr.mxu0 0.0
    %364 = vmatpush1.msra.mxu0 0.0
    %365 = vmatprep.subr.mxu0 0.0
    %366 = vmatpush1.msra.mxu0 0.0
    %367 = vmatprep.subr.mxu0 0.0
    %368 = vmatpush1.msra.mxu0 0.0
    %369 = vmatprep.subr.mxu0 0.0
    %370 = vmatpush1.msra.mxu0 0.0
    %371 = vmatprep.subr.mxu0 0.0
    %372 = vmatpush1.msra.mxu0 0.0
    %373 = vmatprep.mubr.f32.mxu0 0.0
    %374 = vmatmul.mubr.f32.gmra.mrb[0].mxu0 %v220
    %v375 = vpop.f32.mrb[0].mxu0
    %v376 = vadd.f32 0.0, %v375
    %v377 = vpop.f32.mrb[0].mxu0
    %378 = vmatprep.mubr.f32.mxu0 0.0
    %379 = vmatmul.mubr.f32.gmra.mrb[0].mxu0 %v225
    %v380 = vpop.f32.mrb[0].mxu0
    %v381 = vadd.f32 0.0, %v380
    %v382 = vpop.f32.mrb[0].mxu0
    %383 = vdwg.mxu0
    %384 = vmatprep.subr.mxu0 0.0
    %385 = vmatpush1.msra.mxu0 %v130
    %386 = vmatprep.subr.mxu0 0.0
    %387 = vmatpush1.msra.mxu0 %v131
    %388 = vmatprep.subr.mxu0 0.0
    %389 = vmatpush1.msra.mxu0 %v132
    %390 = vmatprep.subr.mxu0 0.0
    %391 = vmatpush1.msra.mxu0 %v133
    %392 = vmatprep.subr.mxu0 0.0
    %393 = vmatpush1.msra.mxu0 %v134
    %394 = vmatprep.subr.mxu0 0.0
    %395 = vmatpush1.msra.mxu0 %v135
    %396 = vmatprep.subr.mxu0 0.0
    %397 = vmatpush1.msra.mxu0 %v136
    %398 = vmatprep.subr.mxu0 0.0
    %399 = vmatpush1.msra.mxu0 %v137
    %400 = vmatprep.subr.mxu0 0.0
    %401 = vmatpush1.msra.mxu0 %v138
    %402 = vmatprep.subr.mxu0 0.0
    %403 = vmatpush1.msra.mxu0 %v139
    %404 = vmatprep.subr.mxu0 0.0
    %405 = vmatpush1.msra.mxu0 %v140
    %406 = vmatprep.subr.mxu0 0.0
    %407 = vmatpush1.msra.mxu0 %v141
    %408 = vmatprep.subr.mxu0 0.0
    %409 = vmatpush1.msra.mxu0 %v142
    %410 = vmatprep.subr.mxu0 0.0
    %411 = vmatpush1.msra.mxu0 %v143
    %412 = vmatprep.subr.mxu0 0.0
    %413 = vmatpush1.msra.mxu0 %v144
    %414 = vmatprep.subr.mxu0 0.0
    %415 = vmatpush1.msra.mxu0 %v145
    %416 = vmatprep.subr.mxu0 0.0
    %417 = vmatpush1.msra.mxu0 0.0
    %418 = vmatprep.subr.mxu0 0.0
    %419 = vmatpush1.msra.mxu0 0.0
    %420 = vmatprep.subr.mxu0 0.0
    %421 = vmatpush1.msra.mxu0 0.0
    %422 = vmatprep.subr.mxu0 0.0
    %423 = vmatpush1.msra.mxu0 0.0
    %424 = vmatprep.subr.mxu0 0.0
    %425 = vmatpush1.msra.mxu0 0.0
    %426 = vmatprep.subr.mxu0 0.0
    %427 = vmatpush1.msra.mxu0 0.0
    %428 = vmatprep.subr.mxu0 0.0
    %429 = vmatpush1.msra.mxu0 0.0
    %430 = vmatprep.subr.mxu0 0.0
    %431 = vmatpush1.msra.mxu0 0.0
    %432 = vmatprep.subr.mxu0 0.0
    %433 = vmatpush1.msra.mxu0 0.0
    %434 = vmatprep.subr.mxu0 0.0
    %435 = vmatpush1.msra.mxu0 0.0
    %436 = vmatprep.subr.mxu0 0.0
    %437 = vmatpush1.msra.mxu0 0.0
    %438 = vmatprep.subr.mxu0 0.0
    %439 = vmatpush1.msra.mxu0 0.0
    %440 = vmatprep.subr.mxu0 0.0
    %441 = vmatpush1.msra.mxu0 0.0
    %442 = vmatprep.subr.mxu0 0.0
    %443 = vmatpush1.msra.mxu0 0.0
    %444 = vmatprep.subr.mxu0 0.0
    %445 = vmatpush1.msra.mxu0 0.0
    %446 = vmatprep.subr.mxu0 0.0
    %447 = vmatpush1.msra.mxu0 0.0
    %448 = vmatprep.mubr.f32.mxu0 0.0
    %449 = vmatmul.mubr.f32.gmra.mrb[0].mxu0 %v301
    %v450 = vpop.f32.mrb[0].mxu0
    %v451 = vadd.f32 0.0, %v450
    %v452 = vpop.f32.mrb[0].mxu0
    %453 = vmatprep.mubr.f32.mxu0 0.0
    %454 = vmatmul.mubr.f32.gmra.mrb[0].mxu0 %v306
    %v455 = vpop.f32.mrb[0].mxu0
    %v456 = vadd.f32 0.0, %v455
    %v457 = vpop.f32.mrb[0].mxu0
    %458 = vdwg.mxu0
    %v459 = vadd.f32 %v220, %v301
    %v460 = vadd.f32 %v225, %v306
    %v461 = vadd.f32 %v114, %v130
    %v462 = vadd.f32 %v115, %v131
    %v463 = vadd.f32 %v116, %v132
    %v464 = vadd.f32 %v117, %v133
    %v465 = vadd.f32 %v118, %v134
    %v466 = vadd.f32 %v119, %v135
    %v467 = vadd.f32 %v120, %v136
    %v468 = vadd.f32 %v121, %v137
    %v469 = vadd.f32 %v122, %v138
    %v470 = vadd.f32 %v123, %v139
    %v471 = vadd.f32 %v124, %v140
    %v472 = vadd.f32 %v125, %v141
    %v473 = vadd.f32 %v126, %v142
    %v474 = vadd.f32 %v127, %v143
    %v475 = vadd.f32 %v128, %v144
    %v476 = vadd.f32 %v129, %v145
    %477 = vmatprep.subr.mxu0 0.0
    %478 = vmatpush1.msra.mxu0 %v461
    %479 = vmatprep.subr.mxu0 0.0
    %480 = vmatpush1.msra.mxu0 %v462
    %481 = vmatprep.subr.mxu0 0.0
    %482 = vmatpush1.msra.mxu0 %v463
    %483 = vmatprep.subr.mxu0 0.0
    %484 = vmatpush1.msra.mxu0 %v464
    %485 = vmatprep.subr.mxu0 0.0
    %486 = vmatpush1.msra.mxu0 %v465
    %487 = vmatprep.subr.mxu0 0.0
    %488 = vmatpush1.msra.mxu0 %v466
    %489 = vmatprep.subr.mxu0 0.0
    %490 = vmatpush1.msra.mxu0 %v467
    %491 = vmatprep.subr.mxu0 0.0
    %492 = vmatpush1.msra.mxu0 %v468
    %493 = vmatprep.subr.mxu0 0.0
    %494 = vmatpush1.msra.mxu0 %v469
    %495 = vmatprep.subr.mxu0 0.0
    %496 = vmatpush1.msra.mxu0 %v470
    %497 = vmatprep.subr.mxu0 0.0
    %498 = vmatpush1.msra.mxu0 %v471
    %499 = vmatprep.subr.mxu0 0.0
    %500 = vmatpush1.msra.mxu0 %v472
    %501 = vmatprep.subr.mxu0 0.0
    %502 = vmatpush1.msra.mxu0 %v473
    %503 = vmatprep.subr.mxu0 0.0
    %504 = vmatpush1.msra.mxu0 %v474
    %505 = vmatprep.subr.mxu0 0.0
    %506 = vmatpush1.msra.mxu0 %v475
    %507 = vmatprep.subr.mxu0 0.0
    %508 = vmatpush1.msra.mxu0 %v476
    %509 = vmatprep.subr.mxu0 0.0
    %510 = vmatpush1.msra.mxu0 0.0
    %511 = vmatprep.subr.mxu0 0.0
    %512 = vmatpush1.msra.mxu0 0.0
    %513 = vmatprep.subr.mxu0 0.0
    %514 = vmatpush1.msra.mxu0 0.0
    %515 = vmatprep.subr.mxu0 0.0
    %516 = vmatpush1.msra.mxu0 0.0
    %517 = vmatprep.subr.mxu0 0.0
    %518 = vmatpush1.msra.mxu0 0.0
    %519 = vmatprep.subr.mxu0 0.0
    %520 = vmatpush1.msra.mxu0 0.0
    %521 = vmatprep.subr.mxu0 0.0
    %522 = vmatpush1.msra.mxu0 0.0
    %523 = vmatprep.subr.mxu0 0.0
    %524 = vmatpush1.msra.mxu0 0.0
    %525 = vmatprep.subr.mxu0 0.0
    %526 = vmatpush1.msra.mxu0 0.0
    %527 = vmatprep.subr.mxu0 0.0
    %528 = vmatpush1.msra.mxu0 0.0
    %529 = vmatprep.subr.mxu0 0.0
    %530 = vmatpush1.msra.mxu0 0.0
    %531 = vmatprep.subr.mxu0 0.0
    %532 = vmatpush1.msra.mxu0 0.0
    %533 = vmatprep.subr.mxu0 0.0
    %534 = vmatpush1.msra.mxu0 0.0
    %535 = vmatprep.subr.mxu0 0.0
    %536 = vmatpush1.msra.mxu0 0.0
    %537 = vmatprep.subr.mxu0 0.0
    %538 = vmatpush1.msra.mxu0 0.0
    %539 = vmatprep.subr.mxu0 0.0
    %540 = vmatpush1.msra.mxu0 0.0
    %541 = vmatprep.mubr.f32.mxu0 0.0
    %542 = vmatmul.mubr.f32.gmra.mrb[0].mxu0 %v459
    %v543 = vpop.f32.mrb[0].mxu0
    %v544 = vadd.f32 0.0, %v543
    %v545 = vpop.f32.mrb[0].mxu0
    %546 = vmatprep.mubr.f32.mxu0 0.0
    %547 = vmatmul.mubr.f32.gmra.mrb[0].mxu0 %v460
    %v548 = vpop.f32.mrb[0].mxu0
    %v549 = vadd.f32 0.0, %v548
    %v550 = vpop.f32.mrb[0].mxu0
    %551 = vdwg.mxu0
    %v552 = vsub.f32 %v376, %v451
    %v553 = vsub.f32 %v381, %v456
    %v554 = vsub.f32 %v544, %v376
    %v555 = vsub.f32 %v549, %v381
    %v556 = vsub.f32 %v554, %v451
    %v557 = vsub.f32 %v555, %v456
    %v558 = vmul.f32 %v108, %v552
    %v559 = vmul.f32 %v109, %v553
    %v560 = vmul.f32 %v108, %v556
    %v561 = vmul.f32 %v109, %v557
    %562 = vmatprep.subr.mxu0 0.0
    %563 = vmatpush1.msra.mxu0 %v558
    %564 = vmatprep.subr.mxu0 0.0
    %565 = vmatpush1.msra.mxu0 %v559
    %566 = vmatprep.subr.mxu0 0.0
    %567 = vmatpush1.msra.mxu0 0.0
    %568 = vmatprep.subr.mxu0 0.0
    %569 = vmatpush1.msra.mxu0 0.0
    %570 = vmatprep.subr.mxu0 0.0
    %571 = vmatpush1.msra.mxu0 0.0
    %572 = vmatprep.subr.mxu0 0.0
    %573 = vmatpush1.msra.mxu0 0.0
    %574 = vmatprep.subr.mxu0 0.0
    %575 = vmatpush1.msra.mxu0 0.0
    %576 = vmatprep.subr.mxu0 0.0
    %577 = vmatpush1.msra.mxu0 0.0
    %578 = vmatprep.subr.mxu0 0.0
    %579 = vmatpush1.msra.mxu0 0.0
    %580 = vmatprep.subr.mxu0 0.0
    %581 = vmatpush1.msra.mxu0 0.0
    %582 = vmatprep.subr.mxu0 0.0
    %583 = vmatpush1.msra.mxu0 0.0
    %584 = vmatprep.subr.mxu0 0.0
    %585 = vmatpush1.msra.mxu0 0.0
    %586 = vmatprep.subr.mxu0 0.0
    %587 = vmatpush1.msra.mxu0 0.0
    %588 = vmatprep.subr.mxu0 0.0
    %589 = vmatpush1.msra.mxu0 0.0
    %590 = vmatprep.subr.mxu0 0.0
    %591 = vmatpush1.msra.mxu0 0.0
    %592 = vmatprep.subr.mxu0 0.0
    %593 = vmatpush1.msra.mxu0 0.0
    %594 = vmatprep.subr.mxu0 0.0
    %595 = vmatpush1.msra.mxu0 0.0
    %596 = vmatprep.subr.mxu0 0.0
    %597 = vmatpush1.msra.mxu0 0.0
    %598 = vmatprep.subr.mxu0 0.0
    %599 = vmatpush1.msra.mxu0 0.0
    %600 = vmatprep.subr.mxu0 0.0
    %601 = vmatpush1.msra.mxu0 0.0
    %602 = vmatprep.subr.mxu0 0.0
    %603 = vmatpush1.msra.mxu0 0.0
    %604 = vmatprep.subr.mxu0 0.0
    %605 = vmatpush1.msra.mxu0 0.0
    %606 = vmatprep.subr.mxu0 0.0
    %607 = vmatpush1.msra.mxu0 0.0
    %608 = vmatprep.subr.mxu0 0.0
    %609 = vmatpush1.msra.mxu0 0.0
    %610 = vmatprep.subr.mxu0 0.0
    %611 = vmatpush1.msra.mxu0 0.0
    %612 = vmatprep.subr.mxu0 0.0
    %613 = vmatpush1.msra.mxu0 0.0
    %614 = vmatprep.subr.mxu0 0.0
    %615 = vmatpush1.msra.mxu0 0.0
    %616 = vmatprep.subr.mxu0 0.0
    %617 = vmatpush1.msra.mxu0 0.0
    %618 = vmatprep.subr.mxu0 0.0
    %619 = vmatpush1.msra.mxu0 0.0
    %620 = vmatprep.subr.mxu0 0.0
    %621 = vmatpush1.msra.mxu0 0.0
    %622 = vmatprep.subr.mxu0 0.0
    %623 = vmatpush1.msra.mxu0 0.0
    %624 = vmatprep.subr.mxu0 0.0
    %625 = vmatpush1.msra.mxu0 0.0
    %626 = vmatprep.mubr.f32.mxu0 0.0
    %627 = vmatmul.mubr.f32.gmra.mrb[0].mxu0 %v148
    %v628 = vpop.f32.mrb[0].mxu0
    %v629 = vadd.f32 0.0, %v628
    %v630 = vpop.f32.mrb[0].mxu0
    %631 = vmatprep.mubr.f32.mxu0 0.0
    %632 = vmatmul.mubr.f32.gmra.mrb[0].mxu0 %v151
    %v633 = vpop.f32.mrb[0].mxu0
    %v634 = vadd.f32 0.0, %v633
    %v635 = vpop.f32.mrb[0].mxu0
    %636 = vdwg.mxu0
    %637 = vmatprep.subr.mxu0 0.0
    %638 = vmatpush1.msra.mxu0 %v560
    %639 = vmatprep.subr.mxu0 0.0
    %640 = vmatpush1.msra.mxu0 %v561
    %641 = vmatprep.subr.mxu0 0.0
    %642 = vmatpush1.msra.mxu0 0.0
    %643 = vmatprep.subr.mxu0 0.0
    %644 = vmatpush1.msra.mxu0 0.0
    %645 = vmatprep.subr.mxu0 0.0
    %646 = vmatpush1.msra.mxu0 0.0
    %647 = vmatprep.subr.mxu0 0.0
    %648 = vmatpush1.msra.mxu0 0.0
    %649 = vmatprep.subr.mxu0 0.0
    %650 = vmatpush1.msra.mxu0 0.0
    %651 = vmatprep.subr.mxu0 0.0
    %652 = vmatpush1.msra.mxu0 0.0
    %653 = vmatprep.subr.mxu0 0.0
    %654 = vmatpush1.msra.mxu0 0.0
    %655 = vmatprep.subr.mxu0 0.0
    %656 = vmatpush1.msra.mxu0 0.0
    %657 = vmatprep.subr.mxu0 0.0
    %658 = vmatpush1.msra.mxu0 0.0
    %659 = vmatprep.subr.mxu0 0.0
    %660 = vmatpush1.msra.mxu0 0.0
    %661 = vmatprep.subr.mxu0 0.0
    %662 = vmatpush1.msra.mxu0 0.0
    %663 = vmatprep.subr.mxu0 0.0
    %664 = vmatpush1.msra.mxu0 0.0
    %665 = vmatprep.subr.mxu0 0.0
    %666 = vmatpush1.msra.mxu0 0.0
    %667 = vmatprep.subr.mxu0 0.0
    %668 = vmatpush1.msra.mxu0 0.0
    %669 = vmatprep.subr.mxu0 0.0
    %670 = vmatpush1.msra.mxu0 0.0
    %671 = vmatprep.subr.mxu0 0.0
    %672 = vmatpush1.msra.mxu0 0.0
    %673 = vmatprep.subr.mxu0 0.0
    %674 = vmatpush1.msra.mxu0 0.0
    %675 = vmatprep.subr.mxu0 0.0
    %676 = vmatpush1.msra.mxu0 0.0
    %677 = vmatprep.subr.mxu0 0.0
    %678 = vmatpush1.msra.mxu0 0.0
    %679 = vmatprep.subr.mxu0 0.0
    %680 = vmatpush1.msra.mxu0 0.0
    %681 = vmatprep.subr.mxu0 0.0
    %682 = vmatpush1.msra.mxu0 0.0
    %683 = vmatprep.subr.mxu0 0.0
    %684 = vmatpush1.msra.mxu0 0.0
    %685 = vmatprep.subr.mxu0 0.0
    %686 = vmatpush1.msra.mxu0 0.0
    %687 = vmatprep.subr.mxu0 0.0
    %688 = vmatpush1.msra.mxu0 0.0
    %689 = vmatprep.subr.mxu0 0.0
    %690 = vmatpush1.msra.mxu0 0.0
    %691 = vmatprep.subr.mxu0 0.0
    %692 = vmatpush1.msra.mxu0 0.0
    %693 = vmatprep.subr.mxu0 0.0
    %694 = vmatpush1.msra.mxu0 0.0
    %695 = vmatprep.subr.mxu0 0.0
    %696 = vmatpush1.msra.mxu0 0.0
    %697 = vmatprep.subr.mxu0 0.0
    %698 = vmatpush1.msra.mxu0 0.0
    %699 = vmatprep.subr.mxu0 0.0
    %700 = vmatpush1.msra.mxu0 0.0
    %701 = vmatprep.mubr.f32.mxu0 0.0
    %702 = vmatmul.mubr.f32.gmra.mrb[0].mxu0 %v229
    %v703 = vpop.f32.mrb[0].mxu0
    %v704 = vadd.f32 0.0, %v703
    %v705 = vpop.f32.mrb[0].mxu0
    %706 = vmatprep.mubr.f32.mxu0 0.0
    %707 = vmatmul.mubr.f32.gmra.mrb[0].mxu0 %v232
    %v708 = vpop.f32.mrb[0].mxu0
    %v709 = vadd.f32 0.0, %v708
    %v710 = vpop.f32.mrb[0].mxu0
    %711 = vdwg.mxu0
    %v712 = vsub.f32 %v110, %v112
    %v713 = vsub.f32 %v111, %v113
    %v714 = vadd.f32 %v558, %v560
    %v715 = vadd.f32 %v559, %v561
    %v717 = vsel %vm146, %v712, 0
    %v720 = vsel %vm146, %v713, 0
    %722 = vmatprep.subr.mxu0 0.0
    %723 = vmatpush1.msra.mxu0 %v714
    %724 = vmatprep.subr.mxu0 0.0
    %725 = vmatpush1.msra.mxu0 %v715
    %726 = vmatprep.subr.mxu0 0.0
    %727 = vmatpush1.msra.mxu0 0.0
    %728 = vmatprep.subr.mxu0 0.0
    %729 = vmatpush1.msra.mxu0 0.0
    %730 = vmatprep.subr.mxu0 0.0
    %731 = vmatpush1.msra.mxu0 0.0
    %732 = vmatprep.subr.mxu0 0.0
    %733 = vmatpush1.msra.mxu0 0.0
    %734 = vmatprep.subr.mxu0 0.0
    %735 = vmatpush1.msra.mxu0 0.0
    %736 = vmatprep.subr.mxu0 0.0
    %737 = vmatpush1.msra.mxu0 0.0
    %738 = vmatprep.subr.mxu0 0.0
    %739 = vmatpush1.msra.mxu0 0.0
    %740 = vmatprep.subr.mxu0 0.0
    %741 = vmatpush1.msra.mxu0 0.0
    %742 = vmatprep.subr.mxu0 0.0
    %743 = vmatpush1.msra.mxu0 0.0
    %744 = vmatprep.subr.mxu0 0.0
    %745 = vmatpush1.msra.mxu0 0.0
    %746 = vmatprep.subr.mxu0 0.0
    %747 = vmatpush1.msra.mxu0 0.0
    %748 = vmatprep.subr.mxu0 0.0
    %749 = vmatpush1.msra.mxu0 0.0
    %750 = vmatprep.subr.mxu0 0.0
    %751 = vmatpush1.msra.mxu0 0.0
    %752 = vmatprep.subr.mxu0 0.0
    %753 = vmatpush1.msra.mxu0 0.0
    %754 = vmatprep.subr.mxu0 0.0
    %755 = vmatpush1.msra.mxu0 0.0
    %756 = vmatprep.subr.mxu0 0.0
    %757 = vmatpush1.msra.mxu0 0.0
    %758 = vmatprep.subr.mxu0 0.0
    %759 = vmatpush1.msra.mxu0 0.0
    %760 = vmatprep.subr.mxu0 0.0
    %761 = vmatpush1.msra.mxu0 0.0
    %762 = vmatprep.subr.mxu0 0.0
    %763 = vmatpush1.msra.mxu0 0.0
    %764 = vmatprep.subr.mxu0 0.0
    %765 = vmatpush1.msra.mxu0 0.0
    %766 = vmatprep.subr.mxu0 0.0
    %767 = vmatpush1.msra.mxu0 0.0
    %768 = vmatprep.subr.mxu0 0.0
    %769 = vmatpush1.msra.mxu0 0.0
    %770 = vmatprep.subr.mxu0 0.0
    %771 = vmatpush1.msra.mxu0 0.0
    %772 = vmatprep.subr.mxu0 0.0
    %773 = vmatpush1.msra.mxu0 0.0
    %774 = vmatprep.subr.mxu0 0.0
    %775 = vmatpush1.msra.mxu0 0.0
    %776 = vmatprep.subr.mxu0 0.0
    %777 = vmatpush1.msra.mxu0 0.0
    %778 = vmatprep.subr.mxu0 0.0
    %779 = vmatpush1.msra.mxu0 0.0
    %780 = vmatprep.subr.mxu0 0.0
    %781 = vmatpush1.msra.mxu0 0.0
    %782 = vmatprep.subr.mxu0 0.0
    %783 = vmatpush1.msra.mxu0 0.0
    %784 = vmatprep.subr.mxu0 0.0
    %785 = vmatpush1.msra.mxu0 0.0
    %786 = vmatprep.mubr.f32.mxu0 0.0
    %787 = vmatmul.mubr.f32.gmra.mrb[0].mxu0 %v717
    %v788 = vpop.f32.mrb[0].mxu0
    %v789 = vadd.f32 0.0, %v788
    %v790 = vpop.f32.mrb[0].mxu0
    %791 = vmatprep.mubr.f32.mxu0 0.0
    %792 = vmatmul.mubr.f32.gmra.mrb[0].mxu0 %v720
    %v793 = vpop.f32.mrb[0].mxu0
    %v794 = vadd.f32 0.0, %v793
    %v795 = vpop.f32.mrb[0].mxu0
    %796 = vdwg.mxu0
    %v797 = vadd.f32 %v629, %v704
    %v798 = vadd.f32 %v634, %v709
    %v799 = vsub.f32 %v789, %v629
    %v800 = vsub.f32 %v794, %v634
    %v801 = vadd.f32 %v799, %v704
    %v802 = vadd.f32 %v800, %v709
    %803 = vmatprep.subr.mxu0 0.0
    %804 = vmatpush1.msra.mxu0 %v130
    %805 = vmatprep.subr.mxu0 0.0
    %806 = vmatpush1.msra.mxu0 %v131
    %807 = vmatprep.subr.mxu0 0.0
    %808 = vmatpush1.msra.mxu0 %v132
    %809 = vmatprep.subr.mxu0 0.0
    %810 = vmatpush1.msra.mxu0 %v133
    %811 = vmatprep.subr.mxu0 0.0
    %812 = vmatpush1.msra.mxu0 %v134
    %813 = vmatprep.subr.mxu0 0.0
    %814 = vmatpush1.msra.mxu0 %v135
    %815 = vmatprep.subr.mxu0 0.0
    %816 = vmatpush1.msra.mxu0 %v136
    %817 = vmatprep.subr.mxu0 0.0
    %818 = vmatpush1.msra.mxu0 %v137
    %819 = vmatprep.subr.mxu0 0.0
    %820 = vmatpush1.msra.mxu0 %v138
    %821 = vmatprep.subr.mxu0 0.0
    %822 = vmatpush1.msra.mxu0 %v139
    %823 = vmatprep.subr.mxu0 0.0
    %824 = vmatpush1.msra.mxu0 %v140
    %825 = vmatprep.subr.mxu0 0.0
    %826 = vmatpush1.msra.mxu0 %v141
    %827 = vmatprep.subr.mxu0 0.0
    %828 = vmatpush1.msra.mxu0 %v142
    %829 = vmatprep.subr.mxu0 0.0
    %830 = vmatpush1.msra.mxu0 %v143
    %831 = vmatprep.subr.mxu0 0.0
    %832 = vmatpush1.msra.mxu0 %v144
    %833 = vmatprep.subr.mxu0 0.0
    %834 = vmatpush1.msra.mxu0 %v145
    %835 = vmatprep.subr.mxu0 0.0
    %836 = vmatpush1.msra.mxu0 0.0
    %837 = vmatprep.subr.mxu0 0.0
    %838 = vmatpush1.msra.mxu0 0.0
    %839 = vmatprep.subr.mxu0 0.0
    %840 = vmatpush1.msra.mxu0 0.0
    %841 = vmatprep.subr.mxu0 0.0
    %842 = vmatpush1.msra.mxu0 0.0
    %843 = vmatprep.subr.mxu0 0.0
    %844 = vmatpush1.msra.mxu0 0.0
    %845 = vmatprep.subr.mxu0 0.0
    %846 = vmatpush1.msra.mxu0 0.0
    %847 = vmatprep.subr.mxu0 0.0
    %848 = vmatpush1.msra.mxu0 0.0
    %849 = vmatprep.subr.mxu0 0.0
    %850 = vmatpush1.msra.mxu0 0.0
    %851 = vmatprep.subr.mxu0 0.0
    %852 = vmatpush1.msra.mxu0 0.0
    %853 = vmatprep.subr.mxu0 0.0
    %854 = vmatpush1.msra.mxu0 0.0
    %855 = vmatprep.subr.mxu0 0.0
    %856 = vmatpush1.msra.mxu0 0.0
    %857 = vmatprep.subr.mxu0 0.0
    %858 = vmatpush1.msra.mxu0 0.0
    %859 = vmatprep.subr.mxu0 0.0
    %860 = vmatpush1.msra.mxu0 0.0
    %861 = vmatprep.subr.mxu0 0.0
    %862 = vmatpush1.msra.mxu0 0.0
    %863 = vmatprep.subr.mxu0 0.0
    %864 = vmatpush1.msra.mxu0 0.0
    %865 = vmatprep.subr.mxu0 0.0
    %866 = vmatpush1.msra.mxu0 0.0
    %867 = vmatprep.mubr.f32.mxu0 0.0
    %868 = vmatmul.mubr.f32.gmra.mrb[0].mxu0 %v801
    %v869 = vpop.f32.mrb[0].mxu0
    %v870 = vadd.f32 0.0, %v869
    %v871 = vpop.f32.mrb[0].mxu0
    %872 = vmatprep.mubr.f32.mxu0 0.0
    %873 = vmatmul.mubr.f32.gmra.mrb[0].mxu0 %v802
    %v874 = vpop.f32.mrb[0].mxu0
    %v875 = vadd.f32 0.0, %v874
    %v876 = vpop.f32.mrb[0].mxu0
    %877 = vdwg.mxu0
    %878 = vmatprep.subr.mxu0 0.0
    %879 = vmatpush1.msra.mxu0 %v114
    %880 = vmatprep.subr.mxu0 0.0
    %881 = vmatpush1.msra.mxu0 %v115
    %882 = vmatprep.subr.mxu0 0.0
    %883 = vmatpush1.msra.mxu0 %v116
    %884 = vmatprep.subr.mxu0 0.0
    %885 = vmatpush1.msra.mxu0 %v117
    %886 = vmatprep.subr.mxu0 0.0
    %887 = vmatpush1.msra.mxu0 %v118
    %888 = vmatprep.subr.mxu0 0.0
    %889 = vmatpush1.msra.mxu0 %v119
    %890 = vmatprep.subr.mxu0 0.0
    %891 = vmatpush1.msra.mxu0 %v120
    %892 = vmatprep.subr.mxu0 0.0
    %893 = vmatpush1.msra.mxu0 %v121
    %894 = vmatprep.subr.mxu0 0.0
    %895 = vmatpush1.msra.mxu0 %v122
    %896 = vmatprep.subr.mxu0 0.0
    %897 = vmatpush1.msra.mxu0 %v123
    %898 = vmatprep.subr.mxu0 0.0
    %899 = vmatpush1.msra.mxu0 %v124
    %900 = vmatprep.subr.mxu0 0.0
    %901 = vmatpush1.msra.mxu0 %v125
    %902 = vmatprep.subr.mxu0 0.0
    %903 = vmatpush1.msra.mxu0 %v126
    %904 = vmatprep.subr.mxu0 0.0
    %905 = vmatpush1.msra.mxu0 %v127
    %906 = vmatprep.subr.mxu0 0.0
    %907 = vmatpush1.msra.mxu0 %v128
    %908 = vmatprep.subr.mxu0 0.0
    %909 = vmatpush1.msra.mxu0 %v129
    %910 = vmatprep.subr.mxu0 0.0
    %911 = vmatpush1.msra.mxu0 0.0
    %912 = vmatprep.subr.mxu0 0.0
    %913 = vmatpush1.msra.mxu0 0.0
    %914 = vmatprep.subr.mxu0 0.0
    %915 = vmatpush1.msra.mxu0 0.0
    %916 = vmatprep.subr.mxu0 0.0
    %917 = vmatpush1.msra.mxu0 0.0
    %918 = vmatprep.subr.mxu0 0.0
    %919 = vmatpush1.msra.mxu0 0.0
    %920 = vmatprep.subr.mxu0 0.0
    %921 = vmatpush1.msra.mxu0 0.0
    %922 = vmatprep.subr.mxu0 0.0
    %923 = vmatpush1.msra.mxu0 0.0
    %924 = vmatprep.subr.mxu0 0.0
    %925 = vmatpush1.msra.mxu0 0.0
    %926 = vmatprep.subr.mxu0 0.0
    %927 = vmatpush1.msra.mxu0 0.0
    %928 = vmatprep.subr.mxu0 0.0
    %929 = vmatpush1.msra.mxu0 0.0
    %930 = vmatprep.subr.mxu0 0.0
    %931 = vmatpush1.msra.mxu0 0.0
    %932 = vmatprep.subr.mxu0 0.0
    %933 = vmatpush1.msra.mxu0 0.0
    %934 = vmatprep.subr.mxu0 0.0
    %935 = vmatpush1.msra.mxu0 0.0
    %936 = vmatprep.subr.mxu0 0.0
    %937 = vmatpush1.msra.mxu0 0.0
    %938 = vmatprep.subr.mxu0 0.0
    %939 = vmatpush1.msra.mxu0 0.0
    %940 = vmatprep.subr.mxu0 0.0
    %941 = vmatpush1.msra.mxu0 0.0
    %942 = vmatprep.mubr.f32.mxu0 0.0
    %943 = vmatmul.mubr.f32.gmra.mrb[0].mxu0 %v797
    %v944 = vpop.f32.mrb[0].mxu0
    %v945 = vadd.f32 %v870, %v944
    %v946 = vpop.f32.mrb[0].mxu0
    %947 = vmatprep.mubr.f32.mxu0 0.0
    %948 = vmatmul.mubr.f32.gmra.mrb[0].mxu0 %v798
    %v949 = vpop.f32.mrb[0].mxu0
    %v950 = vadd.f32 %v875, %v949
    %v951 = vpop.f32.mrb[0].mxu0
    %952 = vdwg.mxu0
    %953 = vst [vmem:[#allocation13] sm:$0xff] %v945
    %954 = vst [vmem:[#allocation13 + $0x8] sm:$0xff] %v950
    // Predicated region
    $region50: #{tpu_custom_call.1} parent=1 // pred_check
      _
    $region51: #{tpu_custom_call.1} parent=1 // pred_check_branch
      %956 = sbr.rel (0) target = $region53
    $region52: #{tpu_custom_call.1} parent=1 // pred_region
      %s958 = ssub.s32 256, 256
      %959 = vsyncadd [#allocation4], %s958
      %s960 = sshll.u32 [#allocation13], 4
      %s961 = int_to_ptr.vmem [resolvable:$true] %s960
      %966 = dma.vmem_to_hbm [thread:$0]  %s961, 256, %s6, [#allocation4], 128, 128, 8
    $region53: #{tpu_custom_call.1} parent=1 // pred_fallthru
      _
    // Predicated region
    $region54: #{tpu_custom_call.1} parent=1 // pred_check
      _
    $region55: #{tpu_custom_call.1} parent=1 // pred_check_branch
      %968 = sbr.rel (0) target = $region57
    $region56: #{tpu_custom_call.1} parent=1 // pred_region
      %969 = dma.done [#allocation4], 256
    $region57: #{tpu_custom_call.1} parent=1 // pred_fallthru
      _
    %970 = vsyncpa [#allocation3], 1
    %971 = vsyncpa [#allocation6], 1
    %972 = vsyncpa [#allocation9], 1
    %973 = vsyncpa [#allocation12], 1
    %974 = vsyncpa [#allocation4], 1

</llo_original>
